<compile_context>
chip_gen: v6e
topology: v6e:2x2x1
jax: 0.10.0
libtpu: 0.0.40
codegen_flags: <defaults>
</compile_context>

<pallas_src>
import functools

import jax
import jax.numpy as jnp
from jax.experimental import pallas as pl
from jax.experimental.pallas import tpu as pltpu

LANES = 128


def _msle_kernel(p_ref, a_ref, o_ref, *, block_rows: int, total_rows: int,
                 needs_mask: bool):
    """Accumulates sum of (log(p+1)-log(a+1))^2 into the resident (8,128) output."""
    j = pl.program_id(0)

    @pl.when(j == 0)
    def _():
        o_ref[...] = jnp.zeros_like(o_ref)

    def squared_log_diff():
        p = p_ref[...].astype(jnp.float32)
        a = a_ref[...].astype(jnp.float32)
        # match torch.log(x + 1) exactly (not log1p)
        d = jnp.log(p + 1.0) - jnp.log(a + 1.0)
        return d * d

    def accumulate(sq):
        # Leading-axis reduce onto one (8, LANES) vreg: plain VPU adds (no XLU),
        # then a single-vreg += into the resident output block.
        o_ref[...] += jnp.sum(sq.reshape(block_rows // 8, 8, LANES), axis=0)

    if needs_mask:
        nb = pl.num_programs(0)
        is_tail = j == nb - 1

        @pl.when(jnp.logical_not(is_tail))
        def _():
            accumulate(squared_log_diff())          # interior tiles: no mask ops

        @pl.when(is_tail)
        def _():
            # Ragged last block: rows >= total_rows are out-of-bounds garbage in
            # the VMEM window; select them to 0 (select, so NaNs don't propagate).
            row0 = j * block_rows
            row_ids = row0 + jax.lax.broadcasted_iota(
                jnp.int32, (block_rows, LANES), 0)
            accumulate(jnp.where(row_ids < total_rows, squared_log_diff(), 0.0))
    else:
        accumulate(squared_log_diff())


def msle_loss(pred: jax.Array, actual: jax.Array, *, block_rows: int = 8192) -> jax.Array:
    assert pred.shape == actual.shape, "pred/actual must have identical shapes"
    n = pred.size

    pred_flat = pred.reshape(-1)
    actual_flat = actual.reshape(-1)

    min_elems = 8 * LANES  # one (8, 128) tile
    if n < min_elems:
        # Tiny input: a one-tile zero pad is negligible; zero pads on BOTH
        # inputs contribute log(1)-log(1)=0, so no masking needed.
        pad = min_elems - n
        p_main = jnp.pad(pred_flat, (0, pad)).reshape(8, LANES)
        a_main = jnp.pad(actual_flat, (0, pad)).reshape(8, LANES)
        rows = 8
        rem_sum = jnp.float32(0.0)
    else:
        rows = n // LANES
        n_aligned = rows * LANES
        rem = n - n_aligned
        if rem:
            # Fold the <128-element ragged tail in with plain jnp instead of a
            # full-array jnp.pad copy (kernel is HBM-bound; the tail is ~free).
            p_t = pred_flat[n_aligned:].astype(jnp.float32)
            a_t = actual_flat[n_aligned:].astype(jnp.float32)
            dt = jnp.log(p_t + 1.0) - jnp.log(a_t + 1.0)
            rem_sum = jnp.sum(dt * dt)
            pred_flat = pred_flat[:n_aligned]
            actual_flat = actual_flat[:n_aligned]
        else:
            rem_sum = jnp.float32(0.0)
        p_main = pred_flat.reshape(rows, LANES)
        a_main = actual_flat.reshape(rows, LANES)

    # Tile sizing: multiple of 8 sublanes, never larger than the 8-aligned row
    # count (so every block shape satisfies the (8,128) constraint and at most
    # the last block is ragged).
    block_rows = max(8, (block_rows // 8) * 8)
    eff = min(block_rows, (rows // 8) * 8)
    nblocks = pl.cdiv(rows, eff)
    needs_mask = (rows % eff) != 0

    kernel = functools.partial(
        _msle_kernel, block_rows=eff, total_rows=rows, needs_mask=needs_mask)

    partial = pl.pallas_call(
        kernel,
        out_shape=jax.ShapeDtypeStruct((8, LANES), jnp.float32),
        grid_spec=pltpu.PrefetchScalarGridSpec(
            num_scalar_prefetch=0,
            grid=(nblocks,),
            in_specs=[
                pl.BlockSpec((eff, LANES), lambda j: (j, 0)),
                pl.BlockSpec((eff, LANES), lambda j: (j, 0)),
            ],
            # Constant block index across the (only) grid axis -> output stays
            # resident in VMEM and acts as the accumulator; written back once.
            out_specs=pl.BlockSpec((8, LANES), lambda j: (0, 0)),
        ),
        compiler_params=pltpu.CompilerParams(
            dimension_semantics=("arbitrary",),
            vmem_limit_bytes=48 * 1024 * 1024,
        ),
    )(p_main, a_main)

    # Final tiny reduce (1024 elems) + ragged tail + mean, in the wrapper.
    return (jnp.sum(partial) + rem_sum) / jnp.float32(n)


def _ref_msle(pred, actual):
    p = pred.astype(jnp.float32)
    a = actual.astype(jnp.float32)
    return jnp.mean((jnp.log(p + 1.0) - jnp.log(a + 1.0)) ** 2)


if __name__ == "__main__":
    key = jax.random.PRNGKey(0)
    k = jax.random.split(key, 8)

    # 1) Primary NCHW-like case: (2, 4, 16, 16) = 2048 elems (16 lane rows).
    shape = (2, 4, 16, 16)
    pred = jax.random.uniform(k[0], shape, jnp.float32, 0.0, 5.0)
    actual = jax.random.uniform(k[1], shape, jnp.float32, 0.0, 5.0)
    loss = msle_loss(pred, actual)
    jax.block_until_ready(loss)
    ref = _ref_msle(pred, actual)
    assert jnp.allclose(loss, ref, rtol=1e-5, atol=1e-6), (loss, ref)

    # 2) Multi-block ragged rows + non-multiple-of-128 tail
    #    (2720 elems -> 21 full rows, ragged masked last block, 32-elem jnp tail).
    shape2 = (2, 4, 20, 17)
    pred2 = jax.random.uniform(k[2], shape2, jnp.float32, 0.0, 5.0)
    actual2 = jax.random.uniform(k[3], shape2, jnp.float32, 0.0, 5.0)
    loss2 = msle_loss(pred2, actual2, block_rows=8)
    jax.block_until_ready(loss2)
    ref2 = _ref_msle(pred2, actual2)
    assert jnp.allclose(loss2, ref2, rtol=1e-5, atol=1e-6), (loss2, ref2)

    # 3) bf16 inputs (native-dtype load, in-register cast to f32).
    shape3 = (2, 8, 128)
    pred3 = jax.random.uniform(k[4], shape3, jnp.float32, 0.0, 5.0).astype(jnp.bfloat16)
    actual3 = jax.random.uniform(k[5], shape3, jnp.float32, 0.0, 5.0).astype(jnp.bfloat16)
    loss3 = msle_loss(pred3, actual3)
    jax.block_until_ready(loss3)
    ref3 = _ref_msle(pred3, actual3)
    assert jnp.allclose(loss3, ref3, rtol=1e-5, atol=1e-6), (loss3, ref3)

    # 4) Tiny input (< one tile) exercises the cheap one-tile pad path.
    shape4 = (3, 5, 7)
    pred4 = jax.random.uniform(k[6], shape4, jnp.float32, 0.0, 5.0)
    actual4 = jax.random.uniform(k[7], shape4, jnp.float32, 0.0, 5.0)
    loss4 = msle_loss(pred4, actual4)
    jax.block_until_ready(loss4)
    ref4 = _ref_msle(pred4, actual4)
    assert jnp.allclose(loss4, ref4, rtol=1e-5, atol=1e-6), (loss4, ref4)

    print("KERNEL_OK")
</pallas_src>

<mosaic_0001>
module attributes {stable_mosaic.version = 11 : i64} {
  func.func @_msle_kernel(%arg0: i32, %arg1: memref<16x128xf32, #tpu.memory_space<vmem>>, %arg2: memref<16x128xf32, #tpu.memory_space<vmem>>, %arg3: memref<8x128xf32, #tpu.memory_space<vmem>>) attributes {dimension_semantics = [#tpu.dimension_semantics<arbitrary>], iteration_bounds = array<i64: 1>, scalar_prefetch = 0 : i64, scratch_operands = 0 : i64, tpu.core_type = #tpu.core_type<tc>, window_params = [{transform_indices = @transform_0, window_bounds = array<i64: 16, 128>}, {transform_indices = @transform_1, window_bounds = array<i64: 16, 128>}, {pipeline_mode = #tpu.pipeline_mode<synchronous>, transform_indices = @transform_2, window_bounds = array<i64: 8, 128>}]} {
    %c0_i32 = arith.constant 0 : i32
    %0 = arith.cmpi eq, %arg0, %c0_i32 : i32
    %1 = arith.extui %0 : i1 to i32
    %c0_i32_0 = arith.constant 0 : i32
    %2 = arith.cmpi ne, %1, %c0_i32_0 : i32
    scf.if %2 {
      %cst_10 = arith.constant 0.000000e+00 : f32
      %18 = vector.broadcast %cst_10 : f32 to vector<8x128xf32>
      %c0_11 = arith.constant 0 : index
      %c0_12 = arith.constant 0 : index
      %19 = vector.load %arg3[%c0_11, %c0_12] : memref<8x128xf32, #tpu.memory_space<vmem>>, vector<8x128xf32>
      tpu.vector_store %arg3[%c0_11, %c0_12], %18 {strides = array<i32>} : memref<8x128xf32, #tpu.memory_space<vmem>>, vector<8x128xf32>,
    } else {
    }
    %c0 = arith.constant 0 : index
    %c0_1 = arith.constant 0 : index
    %3 = vector.load %arg1[%c0, %c0_1] : memref<16x128xf32, #tpu.memory_space<vmem>>, vector<16x128xf32>
    %c0_2 = arith.constant 0 : index
    %c0_3 = arith.constant 0 : index
    %4 = vector.load %arg2[%c0_2, %c0_3] : memref<16x128xf32, #tpu.memory_space<vmem>>, vector<16x128xf32>
    %cst = arith.constant 1.000000e+00 : f32
    %5 = vector.broadcast %cst : f32 to vector<16x128xf32>
    %6 = arith.addf %3, %5 : vector<16x128xf32>
    %7 = math.log %6 : vector<16x128xf32>
    %cst_4 = arith.constant 1.000000e+00 : f32
    %8 = vector.broadcast %cst_4 : f32 to vector<16x128xf32>
    %9 = arith.addf %4, %8 : vector<16x128xf32>
    %10 = math.log %9 : vector<16x128xf32>
    %11 = arith.subf %7, %10 : vector<16x128xf32>
    %12 = arith.mulf %11, %11 : vector<16x128xf32>
    %c0_5 = arith.constant 0 : index
    %c0_6 = arith.constant 0 : index
    %13 = vector.load %arg3[%c0_5, %c0_6] : memref<8x128xf32, #tpu.memory_space<vmem>>, vector<8x128xf32>
    %14 = vector.shape_cast %12 : vector<16x128xf32> to vector<2x8x128xf32>
    %cst_7 = arith.constant dense<0.000000e+00> : vector<8x128xf32>
    %15 = vector.multi_reduction <add>, %14, %cst_7 [0] : vector<2x8x128xf32> to vector<8x128xf32>
    %16 = arith.addf %13, %15 : vector<8x128xf32>
    %c0_8 = arith.constant 0 : index
    %c0_9 = arith.constant 0 : index
    %17 = vector.load %arg3[%c0_8, %c0_9] : memref<8x128xf32, #tpu.memory_space<vmem>>, vector<8x128xf32>
    tpu.vector_store %arg3[%c0_8, %c0_9], %16 {strides = array<i32>} : memref<8x128xf32, #tpu.memory_space<vmem>>, vector<8x128xf32>,
    return
  }
  func.func @transform_0(%arg0: i32) -> (i32, i32) {
    %c0_i32 = arith.constant 0 : i32
    %c0_i32_0 = arith.constant 0 : i32
    return %arg0, %c0_i32 : i32, i32
  }
  func.func @transform_1(%arg0: i32) -> (i32, i32) {
    %c0_i32 = arith.constant 0 : i32
    %c0_i32_0 = arith.constant 0 : i32
    return %arg0, %c0_i32 : i32, i32
  }
  func.func @transform_2(%arg0: i32) -> (i32, i32) {
    %c0_i32 = arith.constant 0 : i32
    %c0_i32_0 = arith.constant 0 : i32
    %c0_i32_1 = arith.constant 0 : i32
    return %c0_i32, %c0_i32_0 : i32, i32
  }
}

</mosaic_0001>

<llo_original>
// kernel: tpu_custom_call.1
$region0: #{tpu_custom_call.1}
  #allocation0 [shape = 'u32[]', space=smem, size = 0x4, offset = 0x4, fixed_abs, tag = 'smem constant byte address 0x4 - core index']
  #allocation1 [shape = 'u32[144,128]{1,0:T(1,128)}', space=vmem, size = 0x12000, scoped, tag = 'internal scratch']
  %s0 = inlined_call_operand.hbm [shape: f32[16,128], index: 0, kind: input, shape index: {}]
  %s1 = inlined_call_operand.hbm [shape: f32[16,128], index: 1, kind: input, shape index: {}]
  %s2 = inlined_call_operand.hbm [shape: f32[8,128], index: 2, kind: output, shape index: {}]
  %s3 = sld [smem:[#allocation0]]
  $region30: #{tpu_custom_call.1} parent=0
    _
  %s5 = ssub.s32 1, %s3
  %s6 = scalar_select 0, %s5, %s3
  $region1: #{tpu_custom_call.1} parent=0
    #allocation2 [shape = 'u8[8192]{0}', space=vmem, size = 0x2000, scoped, tag = 'input window, operand 0, single buffered']
    #allocation3 [shape = 's32[1]{0}', space=sflag, size = 0x4, scoped, tag = 'scoped memory for tpu_custom_call.1']
    #allocation4 [shape = 's32[1]{0}', space=sflag, size = 0x4, scoped, tag = 'scoped memory for tpu_custom_call.1']
    #allocation5 [shape = 'u8[8192]{0}', space=vmem, size = 0x2000, scoped, tag = 'input window, operand 1, single buffered']
    #allocation6 [shape = 's32[1]{0}', space=sflag, size = 0x4, scoped, tag = 'scoped memory for tpu_custom_call.1']
    #allocation7 [shape = 'u8[4096]{0}', space=vmem, size = 0x1000, scoped, tag = 'output window, operand 0, single buffered']
    %7 = vsyncpa [#allocation3], 0
    %8 = vsyncpa [#allocation6], 0
    %9 = vsyncpa [#allocation4], 0
    // Predicated region
    $region2: #{tpu_custom_call.1} parent=1 // pred_check
      _
    $region3: #{tpu_custom_call.1} parent=1 // pred_check_branch
      %11 = sbr.rel (0) target = $region5
    $region4: #{tpu_custom_call.1} parent=1 // pred_region
      %s13 = ssub.s32 256, 256
      %14 = vsyncadd [#allocation3], %s13
      %s15 = sshll.u32 [#allocation2], 4
      %s16 = int_to_ptr.vmem [resolvable:$true] %s15
      %21 = dma.hbm_to_vmem [thread:$0]  %s0, 256, %s16, [#allocation3], 128, 128, 8
    $region5: #{tpu_custom_call.1} parent=1 // pred_fallthru
      _
    // Predicated region
    $region6: #{tpu_custom_call.1} parent=1 // pred_check
      _
    $region7: #{tpu_custom_call.1} parent=1 // pred_check_branch
      %23 = sbr.rel (0) target = $region9
    $region8: #{tpu_custom_call.1} parent=1 // pred_region
      %s25 = ssub.s32 256, 256
      %26 = vsyncadd [#allocation6], %s25
      %s27 = sshll.u32 [#allocation5], 4
      %s28 = int_to_ptr.vmem [resolvable:$true] %s27
      %33 = dma.hbm_to_vmem [thread:$0]  %s1, 256, %s28, [#allocation6], 128, 128, 8
    $region9: #{tpu_custom_call.1} parent=1 // pred_fallthru
      _
    // Predicated region
    $region10: #{tpu_custom_call.1} parent=1 // pred_check
      _
    $region11: #{tpu_custom_call.1} parent=1 // pred_check_branch
      %35 = sbr.rel (0) target = $region13
    $region12: #{tpu_custom_call.1} parent=1 // pred_region
      %36 = dma.done [#allocation3], 256
    $region13: #{tpu_custom_call.1} parent=1 // pred_fallthru
      _
    // Predicated region
    $region14: #{tpu_custom_call.1} parent=1 // pred_check
      _
    $region15: #{tpu_custom_call.1} parent=1 // pred_check_branch
      %38 = sbr.rel (0) target = $region17
    $region16: #{tpu_custom_call.1} parent=1 // pred_region
      %39 = dma.done [#allocation6], 256
    $region17: #{tpu_custom_call.1} parent=1 // pred_fallthru
      _
    %p40 = scmp.eq.s32.totalorder 0, 0
    // Predicated region
    $region18: #{tpu_custom_call.1} parent=1 // pred_check
      %p41 = pneg %p40
    $region19: #{tpu_custom_call.1} parent=1 // pred_check_branch
      %43 = sbr.rel (%p41) target = $region21
    $region20: #{tpu_custom_call.1} parent=1 // pred_region
      %44 = vst [vmem:[#allocation7] sm:$0xff] 0.0
    $region21: #{tpu_custom_call.1} parent=1 // pred_fallthru
      _
    %v45 = vld [vmem:[#allocation2] sm:$0xff]
    %v46 = vld [vmem:[#allocation2 + $0x8] sm:$0xff]
    %v47 = vld [vmem:[#allocation5] sm:$0xff]
    %v48 = vld [vmem:[#allocation5 + $0x8] sm:$0xff]
    %v49 = vadd.f32 %v45, 1.0
    %v50 = vadd.f32 %v46, 1.0
    %v51 = vlog2.pop %v49
    %v52 = vmul.f32 %v51, 0.6931472
    %v53 = vlog2.pop %v50
    %v54 = vmul.f32 %v53, 0.6931472
    %v55 = vadd.f32 %v47, 1.0
    %v56 = vadd.f32 %v48, 1.0
    %v57 = vlog2.pop %v55
    %v58 = vmul.f32 %v57, 0.6931472
    %v59 = vlog2.pop %v56
    %v60 = vmul.f32 %v59, 0.6931472
    %v61 = vsub.f32 %v52, %v58
    %v62 = vsub.f32 %v54, %v60
    %v63 = vmul.f32 %v61, %v61
    %v64 = vmul.f32 %v62, %v62
    %v65 = vld [vmem:[#allocation7] sm:$0xff]
    %v66 = vadd.f32 %v63, %v64
    %v67 = vadd.f32 %v65, %v66
    %68 = vst [vmem:[#allocation7] sm:$0xff] %v67
    // Predicated region
    $region22: #{tpu_custom_call.1} parent=1 // pred_check
      _
    $region23: #{tpu_custom_call.1} parent=1 // pred_check_branch
      %70 = sbr.rel (0) target = $region25
    $region24: #{tpu_custom_call.1} parent=1 // pred_region
      %s72 = ssub.s32 128, 128
      %73 = vsyncadd [#allocation4], %s72
      %s75 = sshll.u32 [#allocation7], 4
      %s76 = int_to_ptr.vmem [resolvable:$true] %s75
      %78 = dma.vmem_to_hbm [thread:$0]  %s76, 128, %s2, [#allocation4]
    $region25: #{tpu_custom_call.1} parent=1 // pred_fallthru
      _
    // Predicated region
    $region26: #{tpu_custom_call.1} parent=1 // pred_check
      _
    $region27: #{tpu_custom_call.1} parent=1 // pred_check_branch
      %80 = sbr.rel (0) target = $region29
    $region28: #{tpu_custom_call.1} parent=1 // pred_region
      %81 = dma.done [#allocation4], 128
    $region29: #{tpu_custom_call.1} parent=1 // pred_fallthru
      _
    %82 = vsyncpa [#allocation3], 1
    %83 = vsyncpa [#allocation6], 1
    %84 = vsyncpa [#allocation4], 1

</llo_original>
